<compile_context>
chip_gen: v6e
topology: v6e:2x2x1
jax: 0.10.0
libtpu: 0.0.40
codegen_flags: <defaults>
</compile_context>

<pallas_src>
import jax
import jax.numpy as jnp
from jax.experimental import pallas as pl
from jax.experimental.pallas import tpu as pltpu

# ---- hyperparameters -------------------------------------------------------
B = 8            # batch of independent forwards on the same (cached) graph
N = 128          # nodes  (multiple of 128 -> fully lane-dense transposed activations)
E = 512          # edges (random; may contain duplicates / self-loops)
IN_C = 8         # in_channels
HID = 16         # hidden_channels
OUT_C = 4        # out_channels
NUM_LAYERS = 4   # -> 2 GCNConv layers
SKIP_COEF = 0.5
BN_EPS = 1e-5
# dropout = 0.5 in __init__, identity in eval-mode forward.


# ---------------------------------------------------------------------------
# Pallas kernel: one grid step = one graph's forward, transposed [C, N] layout.
# ---------------------------------------------------------------------------
def model_kernel(x_ref, at_ref, win_ref, w2_ref, wl_ref, sh1_ref,
                 b0_ref, sh2_ref, bl_ref, o_ref):
    xt = x_ref[0]                     # [IN_C, N]   node features, transposed
    a_t = at_ref[...]                 # [N, N]      A_norm^T (shared, VMEM-resident)

    # Stacked input projections: rows 0..H-1 -> skip path (Linear0),
    # rows H..2H-1 -> folded layer-1 GCN projection (W0 fused into Wg1*scale).
    y = jnp.dot(win_ref[...], xt, preferred_element_type=jnp.float32)     # [2H, N]
    skip = y[0:HID, :] + b0_ref[...]                                      # [H, N]
    hw1 = y[HID:2 * HID, :]                                               # [H, N]

    # GCN layer 1: aggregate + (BN shift, propagated Linear0 bias) + skip + relu
    h1 = jnp.dot(hw1, a_t, preferred_element_type=jnp.float32) + sh1_ref[...]
    h1 = jnp.maximum(h1 + SKIP_COEF * skip, 0.0)

    # GCN layer 2
    hw2 = jnp.dot(w2_ref[...], h1, preferred_element_type=jnp.float32)    # [H, N]
    h2 = jnp.dot(hw2, a_t, preferred_element_type=jnp.float32) + sh2_ref[...]
    h2 = jnp.maximum(h2 + SKIP_COEF * skip, 0.0)

    # sum(out) -> final Linear, written at real width [OUT_C, N] (lane-dense).
    acc = h1 + h2
    o_ref[0] = (jnp.dot(wl_ref[...], acc, preferred_element_type=jnp.float32)
                + bl_ref[...])


# advisory cost estimate for the whole batched call
_FLOPS = B * 2 * ((2 * HID) * IN_C * N      # stacked input projections
                  + 2 * HID * N * N         # two aggregations with A^T
                  + HID * HID * N           # layer-2 projection
                  + OUT_C * HID * N)        # final linear
_BYTES = 4 * (B * IN_C * N + N * N + (2 * HID) * IN_C + HID * HID
              + OUT_C * HID + HID * N + 2 * HID + OUT_C + B * OUT_C * N)


@jax.jit
def gcn_forward(x_batch, a_t, packed):
    """x_batch: [B, N, IN_C]; a_t: A_norm^T [N, N]; packed: folded params."""
    w_in, w2, wl_t, shift1, b0c, sh2c, blc = packed
    x_t = jnp.transpose(x_batch, (0, 2, 1))            # [B, IN_C, N] lane-dense

    out_t = pl.pallas_call(
        model_kernel,
        out_shape=jax.ShapeDtypeStruct((B, OUT_C, N), jnp.float32),
        grid=(B,),
        in_specs=[
            pl.BlockSpec((1, IN_C, N), lambda b: (b, 0, 0)),    # per-graph features
            pl.BlockSpec((N, N), lambda b: (0, 0)),             # A^T  (DMA'd once)
            pl.BlockSpec((2 * HID, IN_C), lambda b: (0, 0)),    # [W0 ; W1] stacked
            pl.BlockSpec((HID, HID), lambda b: (0, 0)),         # layer-2 weight
            pl.BlockSpec((OUT_C, HID), lambda b: (0, 0)),       # final linear weight
            pl.BlockSpec((HID, N), lambda b: (0, 0)),           # layer-1 per-node shift
            pl.BlockSpec((HID, 1), lambda b: (0, 0)),           # Linear0 bias (col)
            pl.BlockSpec((HID, 1), lambda b: (0, 0)),           # layer-2 shift (col)
            pl.BlockSpec((OUT_C, 1), lambda b: (0, 0)),         # final bias (col)
        ],
        out_specs=pl.BlockSpec((1, OUT_C, N), lambda b: (b, 0, 0)),
        compiler_params=pltpu.CompilerParams(dimension_semantics=("parallel",)),
        cost_estimate=pl.CostEstimate(flops=_FLOPS, transcendentals=0,
                                      bytes_accessed=_BYTES),
    )(x_t, a_t, w_in, w2, wl_t, shift1, b0c, sh2c, blc)

    return jnp.transpose(out_t, (0, 2, 1))              # [B, N, OUT_C]


# ---------------------------------------------------------------------------
# Host-side glue: raw params, exact BN/bias/W0 folding, adjacency normalization,
# and a pure-JAX reference built from the RAW (unfolded) parameters.
# ---------------------------------------------------------------------------
def init_raw_params(key):
    ks = jax.random.split(key, 12)
    s = 0.1
    w0  = s * jax.random.normal(ks[0], (HID, IN_C), jnp.float32)   # Linear0 weight
    b0  = s * jax.random.normal(ks[1], (HID,), jnp.float32)        # Linear0 bias
    wg1 = s * jax.random.normal(ks[2], (HID, HID), jnp.float32)    # GCNConv1 lin weight
    bg1 = s * jax.random.normal(ks[3], (HID,), jnp.float32)        # GCNConv1 bias
    g1  = 1.0 + s * jax.random.normal(ks[4], (HID,), jnp.float32)  # BN1 gamma
    be1 = s * jax.random.normal(ks[5], (HID,), jnp.float32)        # BN1 beta
    wg2 = s * jax.random.normal(ks[6], (HID, HID), jnp.float32)    # GCNConv2 lin weight
    bg2 = s * jax.random.normal(ks[7], (HID,), jnp.float32)        # GCNConv2 bias
    g2  = 1.0 + s * jax.random.normal(ks[8], (HID,), jnp.float32)  # BN2 gamma
    be2 = s * jax.random.normal(ks[9], (HID,), jnp.float32)        # BN2 beta
    wl  = s * jax.random.normal(ks[10], (OUT_C, HID), jnp.float32) # Linear_last weight
    bl  = s * jax.random.normal(ks[11], (OUT_C,), jnp.float32)     # Linear_last bias
    return (w0, b0, wg1, bg1, g1, be1, wg2, bg2, g2, be2, wl, bl)


def pack_params(raw, a_norm):
    """Exact eval-mode folding into the transposed-layout kernel parameters.

    Layer math (untransposed): bn1 = A @ (h0 @ Wg1f) + sh1, Wg1f = wg1.T * s1,
    h0 = x @ w0.T + b0.  Folding Linear0: h0 @ Wg1f = x @ W01 + 1⊗c1, so
    A-propagation of the constant row becomes rowsum(A) ⊗ c1, precomputed into a
    per-node shift.  Transposed layout: W1 = W01.T = (s1*wg1) @ w0."""
    (w0, b0, wg1, bg1, g1, be1, wg2, bg2, g2, be2, wl, bl) = raw
    inv_std = 1.0 / jnp.sqrt(1.0 + BN_EPS)         # BN eval: running mean 0, var 1
    s1, s2 = g1 * inv_std, g2 * inv_std

    wg1f = wg1.T * s1[None, :]                     # [HID, HID] BN scale folded
    sh1 = bg1 * s1 + be1                           # [HID]
    sh2 = bg2 * s2 + be2                           # [HID]

    w1 = (s1[:, None] * wg1) @ w0                  # [HID, IN_C]  (= (w0.T @ wg1f).T)
    w_in = jnp.concatenate([w0, w1], axis=0)       # [2*HID, IN_C] stacked skip + layer1
    w2 = s2[:, None] * wg2                         # [HID, HID]   (= Wg2f.T)

    c1 = b0 @ wg1f                                 # Linear0 bias pushed through layer-1 W
    a_rowsum = jnp.sum(a_norm, axis=1)             # A @ 1  (per-node)
    shift1 = c1[:, None] * a_rowsum[None, :] + sh1[:, None]   # [HID, N]

    return (w_in, w2, wl, shift1, b0[:, None], sh2[:, None], bl[:, None])


def edge_index_to_norm_adj(src, dst):
    """Dense A_norm = D^-1/2 (A + I) D^-1/2 matching PyG gcn_norm:
    duplicate non-self-loop edges count multiply; exactly one self-loop of
    weight 1 per node (add_remaining_self_loops). Computed once (cached=True)."""
    counts = jnp.zeros((N, N), jnp.float32).at[dst, src].add(1.0)   # A[dst, src]
    eye = jnp.eye(N, dtype=jnp.float32)
    a_hat = counts * (1.0 - eye) + eye
    deg = jnp.sum(a_hat, axis=1)
    dinv = 1.0 / jnp.sqrt(deg)                                      # deg >= 1 (self-loop)
    return a_hat * dinv[:, None] * dinv[None, :]


def reference_forward(x, a_norm, raw):
    """Pure-JAX single-graph reference using the RAW parameters (validates folding)."""
    (w0, b0, wg1, bg1, g1, be1, wg2, bg2, g2, be2, wl, bl) = raw
    inv_std = 1.0 / jnp.sqrt(1.0 + BN_EPS)
    h = x @ w0.T + b0
    x_skip = h
    acc = jnp.zeros_like(h)
    for wg, bg, g, be in ((wg1, bg1, g1, be1), (wg2, bg2, g2, be2)):
        h = a_norm @ (h @ wg.T) + bg          # GCNConv
        h = h * (g * inv_std) + be            # BatchNorm1d (eval)
        h = h + SKIP_COEF * x_skip            # skip connection
        h = jnp.maximum(h, 0.0)               # relu (dropout = identity)
        acc = acc + h
    return acc @ wl.T + bl


if __name__ == "__main__":
    key = jax.random.PRNGKey(0)
    k_x, k_src, k_dst, k_p = jax.random.split(key, 4)

    x_batch = jax.random.normal(k_x, (B, N, IN_C), jnp.float32)
    src = jax.random.randint(k_src, (E,), 0, N)
    dst = jax.random.randint(k_dst, (E,), 0, N)

    a_norm = edge_index_to_norm_adj(src, dst)   # GCNConv(cached=True): built once
    a_t = a_norm.T                              # transposed-layout aggregation operand
    raw = init_raw_params(k_p)
    packed = pack_params(raw, a_norm)

    out = gcn_forward(x_batch, a_t, packed)
    out = jax.block_until_ready(out)

    ref = jax.vmap(lambda xb: reference_forward(xb, a_norm, raw))(x_batch)
    assert out.shape == (B, N, OUT_C)
    assert bool(jnp.all(jnp.isfinite(out)))
    assert jnp.allclose(out, ref, atol=1e-4, rtol=1e-4)

    print("KERNEL_OK")
</pallas_src>

<mosaic_0001>
module attributes {stable_mosaic.version = 11 : i64} {
  func.func @model_kernel(%arg0: i32, %arg1: memref<1x8x128xf32, #tpu.memory_space<vmem>>, %arg2: memref<128x128xf32, #tpu.memory_space<vmem>>, %arg3: memref<32x8xf32, #tpu.memory_space<vmem>>, %arg4: memref<16x16xf32, #tpu.memory_space<vmem>>, %arg5: memref<4x16xf32, #tpu.memory_space<vmem>>, %arg6: memref<16x128xf32, #tpu.memory_space<vmem>>, %arg7: memref<16x1xf32, #tpu.memory_space<vmem>>, %arg8: memref<16x1xf32, #tpu.memory_space<vmem>>, %arg9: memref<4x1xf32, #tpu.memory_space<vmem>>, %arg10: memref<1x4x128xf32, #tpu.memory_space<vmem>>) attributes {dimension_semantics = [#tpu.dimension_semantics<parallel>], iteration_bounds = array<i64: 8>, scalar_prefetch = 0 : i64, scratch_operands = 0 : i64, tpu.core_type = #tpu.core_type<tc>, window_params = [{transform_indices = @transform_0, window_bounds = array<i64: 1, 8, 128>}, {pipeline_mode = #tpu.pipeline_mode<synchronous>, transform_indices = @transform_1, window_bounds = array<i64: 128, 128>}, {pipeline_mode = #tpu.pipeline_mode<synchronous>, transform_indices = @transform_2, window_bounds = array<i64: 32, 8>}, {pipeline_mode = #tpu.pipeline_mode<synchronous>, transform_indices = @transform_3, window_bounds = array<i64: 16, 16>}, {pipeline_mode = #tpu.pipeline_mode<synchronous>, transform_indices = @transform_4, window_bounds = array<i64: 4, 16>}, {pipeline_mode = #tpu.pipeline_mode<synchronous>, transform_indices = @transform_5, window_bounds = array<i64: 16, 128>}, {pipeline_mode = #tpu.pipeline_mode<synchronous>, transform_indices = @transform_6, window_bounds = array<i64: 16, 1>}, {pipeline_mode = #tpu.pipeline_mode<synchronous>, transform_indices = @transform_7, window_bounds = array<i64: 16, 1>}, {pipeline_mode = #tpu.pipeline_mode<synchronous>, transform_indices = @transform_8, window_bounds = array<i64: 4, 1>}, {transform_indices = @transform_9, window_bounds = array<i64: 1, 4, 128>}]} {
    %c0 = arith.constant 0 : index
    %c0_0 = arith.constant 0 : index
    %c0_1 = arith.constant 0 : index
    %0 = vector.load %arg1[%c0, %c0_0, %c0_1] : memref<1x8x128xf32, #tpu.memory_space<vmem>>, vector<1x8x128xf32>
    %1 = vector.shape_cast %0 : vector<1x8x128xf32> to vector<8x128xf32>
    %c0_2 = arith.constant 0 : index
    %c0_3 = arith.constant 0 : index
    %2 = vector.load %arg2[%c0_2, %c0_3] : memref<128x128xf32, #tpu.memory_space<vmem>>, vector<128x128xf32>
    %c0_4 = arith.constant 0 : index
    %c0_5 = arith.constant 0 : index
    %3 = vector.load %arg3[%c0_4, %c0_5] : memref<32x8xf32, #tpu.memory_space<vmem>>, vector<32x8xf32>
    %cst = arith.constant dense<0.000000e+00> : vector<32x128xf32>
    %4 = tpu.matmul %3, %1, %cst {dimension_numbers = #tpu.dot_dimension_numbers<[1], [0], [0], [1], [0, 0, 1, 1], [], []>} : vector<32x8xf32>, vector<8x128xf32>, vector<32x128xf32> -> vector<32x128xf32>
    %5 = vector.extract_strided_slice %4 {offsets = [0, 0], sizes = [16, 128], strides = [1, 1]} : vector<32x128xf32> to vector<16x128xf32>
    %c0_6 = arith.constant 0 : index
    %c0_7 = arith.constant 0 : index
    %6 = vector.load %arg7[%c0_6, %c0_7] : memref<16x1xf32, #tpu.memory_space<vmem>>, vector<16x1xf32>
    %7 = vector.broadcast %6 : vector<16x1xf32> to vector<16x128xf32>
    %8 = arith.addf %5, %7 : vector<16x128xf32>
    %9 = vector.extract_strided_slice %4 {offsets = [16, 0], sizes = [16, 128], strides = [1, 1]} : vector<32x128xf32> to vector<16x128xf32>
    %cst_8 = arith.constant dense<0.000000e+00> : vector<16x128xf32>
    %10 = tpu.matmul %9, %2, %cst_8 {dimension_numbers = #tpu.dot_dimension_numbers<[1], [0], [0], [1], [0, 0, 1, 1], [], []>} : vector<16x128xf32>, vector<128x128xf32>, vector<16x128xf32> -> vector<16x128xf32>
    %c0_9 = arith.constant 0 : index
    %c0_10 = arith.constant 0 : index
    %11 = vector.load %arg6[%c0_9, %c0_10] : memref<16x128xf32, #tpu.memory_space<vmem>>, vector<16x128xf32>
    %12 = arith.addf %10, %11 : vector<16x128xf32>
    %cst_11 = arith.constant 5.000000e-01 : f32
    %13 = vector.broadcast %cst_11 : f32 to vector<16x128xf32>
    %14 = arith.mulf %13, %8 : vector<16x128xf32>
    %15 = arith.addf %12, %14 : vector<16x128xf32>
    %cst_12 = arith.constant 0.000000e+00 : f32
    %16 = vector.broadcast %cst_12 : f32 to vector<16x128xf32>
    %17 = arith.maximumf %15, %16 : vector<16x128xf32>
    %c0_13 = arith.constant 0 : index
    %c0_14 = arith.constant 0 : index
    %18 = vector.load %arg4[%c0_13, %c0_14] : memref<16x16xf32, #tpu.memory_space<vmem>>, vector<16x16xf32>
    %cst_15 = arith.constant dense<0.000000e+00> : vector<16x128xf32>
    %19 = tpu.matmul %18, %17, %cst_15 {dimension_numbers = #tpu.dot_dimension_numbers<[1], [0], [0], [1], [0, 0, 1, 1], [], []>} : vector<16x16xf32>, vector<16x128xf32>, vector<16x128xf32> -> vector<16x128xf32>
    %cst_16 = arith.constant dense<0.000000e+00> : vector<16x128xf32>
    %20 = tpu.matmul %19, %2, %cst_16 {dimension_numbers = #tpu.dot_dimension_numbers<[1], [0], [0], [1], [0, 0, 1, 1], [], []>} : vector<16x128xf32>, vector<128x128xf32>, vector<16x128xf32> -> vector<16x128xf32>
    %c0_17 = arith.constant 0 : index
    %c0_18 = arith.constant 0 : index
    %21 = vector.load %arg8[%c0_17, %c0_18] : memref<16x1xf32, #tpu.memory_space<vmem>>, vector<16x1xf32>
    %22 = vector.broadcast %21 : vector<16x1xf32> to vector<16x128xf32>
    %23 = arith.addf %20, %22 : vector<16x128xf32>
    %cst_19 = arith.constant 5.000000e-01 : f32
    %24 = vector.broadcast %cst_19 : f32 to vector<16x128xf32>
    %25 = arith.mulf %24, %8 : vector<16x128xf32>
    %26 = arith.addf %23, %25 : vector<16x128xf32>
    %cst_20 = arith.constant 0.000000e+00 : f32
    %27 = vector.broadcast %cst_20 : f32 to vector<16x128xf32>
    %28 = arith.maximumf %26, %27 : vector<16x128xf32>
    %29 = arith.addf %17, %28 : vector<16x128xf32>
    %c0_21 = arith.constant 0 : index
    %c0_22 = arith.constant 0 : index
    %30 = vector.load %arg5[%c0_21, %c0_22] : memref<4x16xf32, #tpu.memory_space<vmem>>, vector<4x16xf32>
    %cst_23 = arith.constant dense<0.000000e+00> : vector<4x128xf32>
    %31 = tpu.matmul %30, %29, %cst_23 {dimension_numbers = #tpu.dot_dimension_numbers<[1], [0], [0], [1], [0, 0, 1, 1], [], []>} : vector<4x16xf32>, vector<16x128xf32>, vector<4x128xf32> -> vector<4x128xf32>
    %c0_24 = arith.constant 0 : index
    %c0_25 = arith.constant 0 : index
    %32 = vector.load %arg9[%c0_24, %c0_25] : memref<4x1xf32, #tpu.memory_space<vmem>>, vector<4x1xf32>
    %33 = vector.broadcast %32 : vector<4x1xf32> to vector<4x128xf32>
    %34 = arith.addf %31, %33 : vector<4x128xf32>
    %c0_26 = arith.constant 0 : index
    %c0_27 = arith.constant 0 : index
    %c0_28 = arith.constant 0 : index
    %35 = vector.load %arg10[%c0_26, %c0_27, %c0_28] : memref<1x4x128xf32, #tpu.memory_space<vmem>>, vector<1x4x128xf32>
    %36 = vector.shape_cast %35 : vector<1x4x128xf32> to vector<4x128xf32>
    %37 = vector.shape_cast %34 : vector<4x128xf32> to vector<1x4x128xf32>
    tpu.vector_store %arg10[%c0_26, %c0_27, %c0_28], %37 {strides = array<i32>} : memref<1x4x128xf32, #tpu.memory_space<vmem>>, vector<1x4x128xf32>,
    return
  }
  func.func @transform_0(%arg0: i32) -> (i32, i32, i32) {
    %c0_i32 = arith.constant 0 : i32
    %c0_i32_0 = arith.constant 0 : i32
    %c0_i32_1 = arith.constant 0 : i32
    return %arg0, %c0_i32, %c0_i32_0 : i32, i32, i32
  }
  func.func @transform_1(%arg0: i32) -> (i32, i32) {
    %c0_i32 = arith.constant 0 : i32
    %c0_i32_0 = arith.constant 0 : i32
    %c0_i32_1 = arith.constant 0 : i32
    return %c0_i32, %c0_i32_0 : i32, i32
  }
  func.func @transform_2(%arg0: i32) -> (i32, i32) {
    %c0_i32 = arith.constant 0 : i32
    %c0_i32_0 = arith.constant 0 : i32
    %c0_i32_1 = arith.constant 0 : i32
    return %c0_i32, %c0_i32_0 : i32, i32
  }
  func.func @transform_3(%arg0: i32) -> (i32, i32) {
    %c0_i32 = arith.constant 0 : i32
    %c0_i32_0 = arith.constant 0 : i32
    %c0_i32_1 = arith.constant 0 : i32
    return %c0_i32, %c0_i32_0 : i32, i32
  }
  func.func @transform_4(%arg0: i32) -> (i32, i32) {
    %c0_i32 = arith.constant 0 : i32
    %c0_i32_0 = arith.constant 0 : i32
    %c0_i32_1 = arith.constant 0 : i32
    return %c0_i32, %c0_i32_0 : i32, i32
  }
  func.func @transform_5(%arg0: i32) -> (i32, i32) {
    %c0_i32 = arith.constant 0 : i32
    %c0_i32_0 = arith.constant 0 : i32
    %c0_i32_1 = arith.constant 0 : i32
    return %c0_i32, %c0_i32_0 : i32, i32
  }
  func.func @transform_6(%arg0: i32) -> (i32, i32) {
    %c0_i32 = arith.constant 0 : i32
    %c0_i32_0 = arith.constant 0 : i32
    %c0_i32_1 = arith.constant 0 : i32
    return %c0_i32, %c0_i32_0 : i32, i32
  }
  func.func @transform_7(%arg0: i32) -> (i32, i32) {
    %c0_i32 = arith.constant 0 : i32
    %c0_i32_0 = arith.constant 0 : i32
    %c0_i32_1 = arith.constant 0 : i32
    return %c0_i32, %c0_i32_0 : i32, i32
  }
  func.func @transform_8(%arg0: i32) -> (i32, i32) {
    %c0_i32 = arith.constant 0 : i32
    %c0_i32_0 = arith.constant 0 : i32
    %c0_i32_1 = arith.constant 0 : i32
    return %c0_i32, %c0_i32_0 : i32, i32
  }
  func.func @transform_9(%arg0: i32) -> (i32, i32, i32) {
    %c0_i32 = arith.constant 0 : i32
    %c0_i32_0 = arith.constant 0 : i32
    %c0_i32_1 = arith.constant 0 : i32
    return %arg0, %c0_i32, %c0_i32_0 : i32, i32, i32
  }
}

</mosaic_0001>

<llo_original>
// kernel: gcn_forward.1
$region0: #{gcn_forward.1}
  #allocation0 [shape = 'u32[]', space=smem, size = 0x4, offset = 0x4, fixed_abs, tag = 'smem constant byte address 0x4 - core index']
  #allocation1 [shape = 'u32[144,128]{1,0:T(1,128)}', space=vmem, size = 0x12000, scoped, tag = 'internal scratch']
  %s0 = inlined_call_operand.vmem [shape: f32[8,8,128], index: 0, kind: input, shape index: {}]
  %s1 = inlined_call_operand.hbm [shape: f32[128,128], index: 1, kind: input, shape index: {}]
  %s2 = inlined_call_operand.vmem [shape: f32[32,8], index: 2, kind: input, shape index: {}]
  %s3 = inlined_call_operand.vmem [shape: f32[16,16], index: 3, kind: input, shape index: {}]
  %s4 = inlined_call_operand.vmem [shape: f32[4,16], index: 4, kind: input, shape index: {}]
  %s5 = inlined_call_operand.hbm [shape: f32[16,128], index: 5, kind: input, shape index: {}]
  %s6 = inlined_call_operand.vmem [shape: f32[16,1], index: 6, kind: input, shape index: {}]
  %s7 = inlined_call_operand.vmem [shape: f32[16,1], index: 7, kind: input, shape index: {}]
  %s8 = inlined_call_operand.vmem [shape: f32[4,1], index: 8, kind: input, shape index: {}]
  %s9 = inlined_call_operand.hbm [shape: f32[8,4,128], index: 9, kind: output, shape index: {}]
  %s10 = sld [smem:[#allocation0]]
  $region77: #{gcn_forward.1} parent=0
    _
  %s12 = ssub.s32 1, %s10
  %s13 = scalar_select 0, %s12, %s10
  $region1: #{gcn_forward.1} parent=0
    #allocation2 [shape = 'u8[65536]{0}', space=vmem, size = 0x10000, scoped, tag = 'input window, operand 1, single buffered']
    #allocation3 [shape = 's32[2]{0}', space=sflag, size = 0x8, scoped, tag = 'scoped memory for gcn_forward.1']
    #allocation4 [shape = 's32[2]{0}', space=sflag, size = 0x8, scoped, tag = 'scoped memory for gcn_forward.1']
    #allocation5 [shape = 'u8[8192]{0}', space=vmem, size = 0x2000, scoped, tag = 'input window, operand 5, single buffered']
    #allocation6 [shape = 's32[1]{0}', space=sflag, size = 0x4, scoped, tag = 'scoped memory for gcn_forward.1']
    #allocation7 [shape = 'u8[4096]{0}', space=vmem, size = 0x1000, scoped, tag = 'output window, operand 0']
    %14 = vsyncpa [#allocation3], 0
    %15 = vsyncpa [#allocation6], 0
    %16 = vsyncpa [#allocation4], 0
    %s17 = scalar_lea.sflag [#allocation4], 1
    %18 = vsyncpa %s17, 0
    loop: start=0, step=1, limit=10
    $region2: #{gcn_forward.1} parent=1 // loop_pre_header
      _
    $region3: #{gcn_forward.1} parent=1 // loop_header
      %s20 = sphi 0, %s24
      %p21 = scmp.ge.s32.totalorder %s20, 10
      %s30 = sphi 0, %s32
      %s33 = sphi 0, %s30
      %s34 = sphi 0, %s33
      %s50 = sphi 0, %s34
      %s54 = sphi 0, %s54
      %s56 = sphi 0, %s54
      %s57 = sphi 0, %s56
      %s71 = sphi 0, %s57
      %s75 = sphi 0, %s75
      %s77 = sphi 0, %s75
      %s78 = sphi 0, %s77
      %s92 = sphi 0, %s78
      %s96 = sphi 0, %s96
      %s98 = sphi 0, %s96
      %s99 = sphi 0, %s98
      %s113 = sphi 0, %s99
      %s117 = sphi 0, %s117
      %s119 = sphi 0, %s117
      %s120 = sphi 0, %s119
      %s134 = sphi 0, %s120
      %s138 = sphi 0, %s138
      %s140 = sphi 0, %s138
      %s141 = sphi 0, %s140
      %s155 = sphi 0, %s141
      %s159 = sphi 0, %s159
      %s161 = sphi 0, %s159
      %s162 = sphi 0, %s161
      %s176 = sphi 0, %s162
      %s180 = sphi 0, %s180
      %s182 = sphi 0, %s180
      %s183 = sphi 0, %s182
      %s197 = sphi 0, %s183
      %s201 = sphi 0, %s201
      %s203 = sphi 0, %s201
      %s204 = sphi 0, %s203
      %s218 = sphi 0, %s204
      %s224 = sphi 0, %s226
      %s227 = sphi 0, %s224
      %s228 = sphi 0, %s227
      %s244 = sphi 0, %s228
    $region4: #{gcn_forward.1} parent=1 // loop_header_branch
      %23 = sbr.rel (%p21) target = $region8
    $region5: #{gcn_forward.1} parent=1 // loop_body
      %s25 = ssub.s32 %s20, 1
      %s26 = ssub.s32 %s20, 2
      %s27 = sadd.s32 %s20, 1
      %s28 = ssub.s32 %s20, %s27
      %p29 = scmp.eq.s32.totalorder %s28, 0
      %s31 = sadd.s32 %s30, 1
      %s32 = scalar_select %p29, %s30, %s31
      %p35 = pneg %p29
      %p36 = scmp.eq.s32.totalorder %s20, 7
      %p37 = por %p35, %p36
      %p38 = scmp.ne.s32.totalorder %s30, %s33
      %p39 = scmp.eq.s32.totalorder %s20, 0
      %p40 = por %p38, %p39
      %p41 = scmp.ne.s32.totalorder %s30, %s33
      %p42 = scmp.eq.s32.totalorder %s25, 7
      %p43 = por %p41, %p42
      %p44 = scmp.ne.s32.totalorder %s33, %s34
      %p45 = scmp.eq.s32.totalorder %s25, 0
      %p46 = por %p44, %p45
      %p47 = scmp.ne.s32.totalorder %s33, %s34
      %p48 = scmp.eq.s32.totalorder %s26, 7
      %p49 = por %p47, %p48
      %p51 = scmp.ne.s32.totalorder %s34, %s50
      %p52 = scmp.eq.s32.totalorder %s26, 0
      %p53 = por %p51, %p52
      %s55 = sadd.s32 %s54, 1
      %p58 = scmp.eq.s32.totalorder %s20, 7
      %p59 = scmp.ne.s32.totalorder %s54, %s56
      %p60 = scmp.eq.s32.totalorder %s20, 0
      %p61 = por %p59, %p60
      %p62 = scmp.ne.s32.totalorder %s54, %s56
      %p63 = scmp.eq.s32.totalorder %s25, 7
      %p64 = por %p62, %p63
      %p65 = scmp.ne.s32.totalorder %s56, %s57
      %p66 = scmp.eq.s32.totalorder %s25, 0
      %p67 = por %p65, %p66
      %p68 = scmp.ne.s32.totalorder %s56, %s57
      %p69 = scmp.eq.s32.totalorder %s26, 7
      %p70 = por %p68, %p69
      %p72 = scmp.ne.s32.totalorder %s57, %s71
      %p73 = scmp.eq.s32.totalorder %s26, 0
      %p74 = por %p72, %p73
      %s76 = sadd.s32 %s75, 1
      %p79 = scmp.eq.s32.totalorder %s20, 7
      %p80 = scmp.ne.s32.totalorder %s75, %s77
      %p81 = scmp.eq.s32.totalorder %s20, 0
      %p82 = por %p80, %p81
      %p83 = scmp.ne.s32.totalorder %s75, %s77
      %p84 = scmp.eq.s32.totalorder %s25, 7
      %p85 = por %p83, %p84
      %p86 = scmp.ne.s32.totalorder %s77, %s78
      %p87 = scmp.eq.s32.totalorder %s25, 0
      %p88 = por %p86, %p87
      %p89 = scmp.ne.s32.totalorder %s77, %s78
      %p90 = scmp.eq.s32.totalorder %s26, 7
      %p91 = por %p89, %p90
      %p93 = scmp.ne.s32.totalorder %s78, %s92
      %p94 = scmp.eq.s32.totalorder %s26, 0
      %p95 = por %p93, %p94
      %s97 = sadd.s32 %s96, 1
      %p100 = scmp.eq.s32.totalorder %s20, 7
      %p101 = scmp.ne.s32.totalorder %s96, %s98
      %p102 = scmp.eq.s32.totalorder %s20, 0
      %p103 = por %p101, %p102
      %p104 = scmp.ne.s32.totalorder %s96, %s98
      %p105 = scmp.eq.s32.totalorder %s25, 7
      %p106 = por %p104, %p105
      %p107 = scmp.ne.s32.totalorder %s98, %s99
      %p108 = scmp.eq.s32.totalorder %s25, 0
      %p109 = por %p107, %p108
      %p110 = scmp.ne.s32.totalorder %s98, %s99
      %p111 = scmp.eq.s32.totalorder %s26, 7
      %p112 = por %p110, %p111
      %p114 = scmp.ne.s32.totalorder %s99, %s113
      %p115 = scmp.eq.s32.totalorder %s26, 0
      %p116 = por %p114, %p115
      %s118 = sadd.s32 %s117, 1
      %p121 = scmp.eq.s32.totalorder %s20, 7
      %p122 = scmp.ne.s32.totalorder %s117, %s119
      %p123 = scmp.eq.s32.totalorder %s20, 0
      %p124 = por %p122, %p123
      %p125 = scmp.ne.s32.totalorder %s117, %s119
      %p126 = scmp.eq.s32.totalorder %s25, 7
      %p127 = por %p125, %p126
      %p128 = scmp.ne.s32.totalorder %s119, %s120
      %p129 = scmp.eq.s32.totalorder %s25, 0
      %p130 = por %p128, %p129
      %p131 = scmp.ne.s32.totalorder %s119, %s120
      %p132 = scmp.eq.s32.totalorder %s26, 7
      %p133 = por %p131, %p132
      %p135 = scmp.ne.s32.totalorder %s120, %s134
      %p136 = scmp.eq.s32.totalorder %s26, 0
      %p137 = por %p135, %p136
      %s139 = sadd.s32 %s138, 1
      %p142 = scmp.eq.s32.totalorder %s20, 7
      %p143 = scmp.ne.s32.totalorder %s138, %s140
      %p144 = scmp.eq.s32.totalorder %s20, 0
      %p145 = por %p143, %p144
      %p146 = scmp.ne.s32.totalorder %s138, %s140
      %p147 = scmp.eq.s32.totalorder %s25, 7
      %p148 = por %p146, %p147
      %p149 = scmp.ne.s32.totalorder %s140, %s141
      %p150 = scmp.eq.s32.totalorder %s25, 0
      %p151 = por %p149, %p150
      %p152 = scmp.ne.s32.totalorder %s140, %s141
      %p153 = scmp.eq.s32.totalorder %s26, 7
      %p154 = por %p152, %p153
      %p156 = scmp.ne.s32.totalorder %s141, %s155
      %p157 = scmp.eq.s32.totalorder %s26, 0
      %p158 = por %p156, %p157
      %s160 = sadd.s32 %s159, 1
      %p163 = scmp.eq.s32.totalorder %s20, 7
      %p164 = scmp.ne.s32.totalorder %s159, %s161
      %p165 = scmp.eq.s32.totalorder %s20, 0
      %p166 = por %p164, %p165
      %p167 = scmp.ne.s32.totalorder %s159, %s161
      %p168 = scmp.eq.s32.totalorder %s25, 7
      %p169 = por %p167, %p168
      %p170 = scmp.ne.s32.totalorder %s161, %s162
      %p171 = scmp.eq.s32.totalorder %s25, 0
      %p172 = por %p170, %p171
      %p173 = scmp.ne.s32.totalorder %s161, %s162
      %p174 = scmp.eq.s32.totalorder %s26, 7
      %p175 = por %p173, %p174
      %p177 = scmp.ne.s32.totalorder %s162, %s176
      %p178 = scmp.eq.s32.totalorder %s26, 0
      %p179 = por %p177, %p178
      %s181 = sadd.s32 %s180, 1
      %p184 = scmp.eq.s32.totalorder %s20, 7
      %p185 = scmp.ne.s32.totalorder %s180, %s182
      %p186 = scmp.eq.s32.totalorder %s20, 0
      %p187 = por %p185, %p186
      %p188 = scmp.ne.s32.totalorder %s180, %s182
      %p189 = scmp.eq.s32.totalorder %s25, 7
      %p190 = por %p188, %p189
      %p191 = scmp.ne.s32.totalorder %s182, %s183
      %p192 = scmp.eq.s32.totalorder %s25, 0
      %p193 = por %p191, %p192
      %p194 = scmp.ne.s32.totalorder %s182, %s183
      %p195 = scmp.eq.s32.totalorder %s26, 7
      %p196 = por %p194, %p195
      %p198 = scmp.ne.s32.totalorder %s183, %s197
      %p199 = scmp.eq.s32.totalorder %s26, 0
      %p200 = por %p198, %p199
      %s202 = sadd.s32 %s201, 1
      %p205 = scmp.eq.s32.totalorder %s20, 7
      %p206 = scmp.ne.s32.totalorder %s201, %s203
      %p207 = scmp.eq.s32.totalorder %s20, 0
      %p208 = por %p206, %p207
      %p209 = scmp.ne.s32.totalorder %s201, %s203
      %p210 = scmp.eq.s32.totalorder %s25, 7
      %p211 = por %p209, %p210
      %p212 = scmp.ne.s32.totalorder %s203, %s204
      %p213 = scmp.eq.s32.totalorder %s25, 0
      %p214 = por %p212, %p213
      %p215 = scmp.ne.s32.totalorder %s203, %s204
      %p216 = scmp.eq.s32.totalorder %s26, 7
      %p217 = por %p215, %p216
      %p219 = scmp.ne.s32.totalorder %s204, %s218
      %p220 = scmp.eq.s32.totalorder %s26, 0
      %p221 = por %p219, %p220
      %s222 = ssub.s32 %s20, %s27
      %p223 = scmp.eq.s32.totalorder %s222, 0
      %s225 = sadd.s32 %s224, 1
      %s226 = scalar_select %p223, %s224, %s225
      %p229 = pneg %p223
      %p230 = scmp.eq.s32.totalorder %s20, 7
      %p231 = por %p229, %p230
      %p232 = scmp.ne.s32.totalorder %s224, %s227
      %p233 = scmp.eq.s32.totalorder %s20, 0
      %p234 = por %p232, %p233
      %p235 = scmp.ne.s32.totalorder %s224, %s227
      %p236 = scmp.eq.s32.totalorder %s25, 7
      %p237 = por %p235, %p236
      %p238 = scmp.ne.s32.totalorder %s227, %s228
      %p239 = scmp.eq.s32.totalorder %s25, 0
      %p240 = por %p238, %p239
      %p241 = scmp.ne.s32.totalorder %s227, %s228
      %p242 = scmp.eq.s32.totalorder %s26, 7
      %p243 = por %p241, %p242
      %p245 = scmp.ne.s32.totalorder %s228, %s244
      %p246 = scmp.eq.s32.totalorder %s26, 0
      %p247 = por %p245, %p246
      %p248 = scmp.le.s32.totalorder 1, %s20
      %p249 = scmp.lt.s32.totalorder %s20, 9
      %p250 = pnand %p248, %p249
      %p251 = pneg %p250
      // Predicated region
      $region9: #{gcn_forward.1} parent=5 // pred_check
        _
      $region10: #{gcn_forward.1} parent=5 // pred_check_branch
        %253 = sbr.rel (%p250) target = $region12
      $region11: #{gcn_forward.1} parent=5 // pred_region
        %s254 = ssub.s32 %s20, 1
        // Predicated region
        $region13: #{gcn_forward.1} parent=11 // pred_check
          %p255 = pneg %p67
        $region14: #{gcn_forward.1} parent=11 // pred_check_branch
          %257 = sbr.rel (%p255) target = $region16
        $region15: #{gcn_forward.1} parent=11 // pred_region
          %s259 = ssub.s32 2048, 2048
          %260 = vsyncadd [#allocation3], %s259
          %s261 = sshll.u32 [#allocation2], 4
          %s262 = int_to_ptr.vmem [resolvable:$true] %s261
          %267 = dma.hbm_to_vmem [thread:$0]  %s1, 2048, %s262, [#allocation3], 128, 128, 8
        $region16: #{gcn_forward.1} parent=11 // pred_fallthru
          _
        // Predicated region
        $region17: #{gcn_forward.1} parent=11 // pred_check
          %p268 = pneg %p88
        $region18: #{gcn_forward.1} parent=11 // pred_check_branch
          %270 = sbr.rel (%p268) target = $region20
        $region19: #{gcn_forward.1} parent=11 // pred_region
          _
        $region20: #{gcn_forward.1} parent=11 // pred_fallthru
          _
        // Predicated region
        $region21: #{gcn_forward.1} parent=11 // pred_check
          %p271 = pneg %p109
        $region22: #{gcn_forward.1} parent=11 // pred_check_branch
          %273 = sbr.rel (%p271) target = $region24
        $region23: #{gcn_forward.1} parent=11 // pred_region
          _
        $region24: #{gcn_forward.1} parent=11 // pred_fallthru
          _
        // Predicated region
        $region25: #{gcn_forward.1} parent=11 // pred_check
          %p274 = pneg %p130
        $region26: #{gcn_forward.1} parent=11 // pred_check_branch
          %276 = sbr.rel (%p274) target = $region28
        $region27: #{gcn_forward.1} parent=11 // pred_region
          _
        $region28: #{gcn_forward.1} parent=11 // pred_fallthru
          _
        // Predicated region
        $region29: #{gcn_forward.1} parent=11 // pred_check
          %p277 = pneg %p151
        $region30: #{gcn_forward.1} parent=11 // pred_check_branch
          %279 = sbr.rel (%p277) target = $region32
        $region31: #{gcn_forward.1} parent=11 // pred_region
          %s281 = ssub.s32 256, 256
          %282 = vsyncadd [#allocation6], %s281
          %s283 = sshll.u32 [#allocation5], 4
          %s284 = int_to_ptr.vmem [resolvable:$true] %s283
          %289 = dma.hbm_to_vmem [thread:$0]  %s5, 256, %s284, [#allocation6], 128, 128, 8
        $region32: #{gcn_forward.1} parent=11 // pred_fallthru
          _
        // Predicated region
        $region33: #{gcn_forward.1} parent=11 // pred_check
          %p290 = pneg %p172
        $region34: #{gcn_forward.1} parent=11 // pred_check_branch
          %292 = sbr.rel (%p290) target = $region36
        $region35: #{gcn_forward.1} parent=11 // pred_region
          _
        $region36: #{gcn_forward.1} parent=11 // pred_fallthru
          _
        // Predicated region
        $region37: #{gcn_forward.1} parent=11 // pred_check
          %p293 = pneg %p193
        $region38: #{gcn_forward.1} parent=11 // pred_check_branch
          %295 = sbr.rel (%p293) target = $region40
        $region39: #{gcn_forward.1} parent=11 // pred_region
          _
        $region40: #{gcn_forward.1} parent=11 // pred_fallthru
          _
        // Predicated region
        $region41: #{gcn_forward.1} parent=11 // pred_check
          %p296 = pneg %p214
        $region42: #{gcn_forward.1} parent=11 // pred_check_branch
          %298 = sbr.rel (%p296) target = $region44
        $region43: #{gcn_forward.1} parent=11 // pred_region
          _
        $region44: #{gcn_forward.1} parent=11 // pred_fallthru
          _
      $region12: #{gcn_forward.1} parent=5 // pred_fallthru
        _
      %p299 = scmp.lt.s32.totalorder %s20, 8
      // Predicated region
      $region45: #{gcn_forward.1} parent=5 // pred_check
        %p300 = pneg %p299
      $region46: #{gcn_forward.1} parent=5 // pred_check_branch
        %302 = sbr.rel (%p300) target = $region48
      $region47: #{gcn_forward.1} parent=5 // pred_region
        // Predicated region
        $region49: #{gcn_forward.1} parent=47 // pred_check
          %p303 = pneg %p40
        $region50: #{gcn_forward.1} parent=47 // pred_check_branch
          %305 = sbr.rel (%p303) target = $region52
        $region51: #{gcn_forward.1} parent=47 // pred_region
          %p306 = scmp.lt.s32.totalorder %s20, 7
          %s307 = scalar_select %p306, %s20, 7
          %s308 = smul.addr %s307, 8
          %s309 = scalar_lea.vmem %s0, %s308
        $region52: #{gcn_forward.1} parent=47 // pred_fallthru
          _
      $region48: #{gcn_forward.1} parent=5 // pred_fallthru
        _
      %p310 = scmp.le.s32.totalorder 1, %s20
      %p311 = scmp.lt.s32.totalorder %s20, 9
      %p312 = pnand %p310, %p311
      %p313 = pneg %p312
      // Predicated region
      $region53: #{gcn_forward.1} parent=5 // pred_check
        _
      $region54: #{gcn_forward.1} parent=5 // pred_check_branch
        %315 = sbr.rel (%p312) target = $region56
      $region55: #{gcn_forward.1} parent=5 // pred_region
        %s316 = ssub.s32 %s20, 1
        // Predicated region
        $region57: #{gcn_forward.1} parent=55 // pred_check
          %p317 = pneg %p67
        $region58: #{gcn_forward.1} parent=55 // pred_check_branch
          %319 = sbr.rel (%p317) target = $region60
        $region59: #{gcn_forward.1} parent=55 // pred_region
          %320 = dma.done [#allocation3], 2048
        $region60: #{gcn_forward.1} parent=55 // pred_fallthru
          _
        // Predicated region
        $region61: #{gcn_forward.1} parent=55 // pred_check
          %p321 = pneg %p151
        $region62: #{gcn_forward.1} parent=55 // pred_check_branch
          %323 = sbr.rel (%p321) target = $region64
        $region63: #{gcn_forward.1} parent=55 // pred_region
          %324 = dma.done [#allocation6], 256
        $region64: #{gcn_forward.1} parent=55 // pred_fallthru
          _
        %p325 = scmp.lt.s32.totalorder %s25, 7
        %s326 = scalar_select %p325, %s25, 7
        %s327 = smul.addr %s326, 8
        %s328 = scalar_lea.vmem %s0, %s327
        %p329 = pneg %p46
        %p330 = pneg %p43
        %p331 = pneg %p67
        %p332 = pneg %p64
        %p333 = pneg %p88
        %p334 = pneg %p85
        %p335 = pneg %p109
        %p336 = pneg %p106
        %p337 = pneg %p130
        %p338 = pneg %p127
        %p339 = pneg %p151
        %p340 = pneg %p148
        %p341 = pneg %p172
        %p342 = pneg %p169
        %p343 = pneg %p193
        %p344 = pneg %p190
        %p345 = pneg %p214
        %p346 = pneg %p211
        %p347 = pneg %p240
        %p348 = pneg %p237
        %s349 = sand.u32 %s227, 1
        %s350 = scalar_lea.sflag [#allocation4], %s349
        %s351 = sand.u32 %s227, 1
        %s352 = smul.addr %s351, 4
        %s353 = scalar_lea.vmem [#allocation7], %s352
        %p354 = scmp.lt.s32.totalorder %s25, 7
        %s355 = scalar_select %p354, %s25, 7
        %s356 = smul.addr %s355, 8
        %s357 = scalar_lea.vmem %s0, %s356
        %v358 = vld [vmem:[%s357] sm:$0xff]
        %v359 = vld [vmem:[#allocation2] sm:$0xff]
        %v360 = vld [vmem:[#allocation2 + $0x8] sm:$0xff]
        %v361 = vld [vmem:[#allocation2 + $0x10] sm:$0xff]
        %v362 = vld [vmem:[#allocation2 + $0x18] sm:$0xff]
        %v363 = vld [vmem:[#allocation2 + $0x20] sm:$0xff]
        %v364 = vld [vmem:[#allocation2 + $0x28] sm:$0xff]
        %v365 = vld [vmem:[#allocation2 + $0x30] sm:$0xff]
        %v366 = vld [vmem:[#allocation2 + $0x38] sm:$0xff]
        %v367 = vld [vmem:[#allocation2 + $0x40] sm:$0xff]
        %v368 = vld [vmem:[#allocation2 + $0x48] sm:$0xff]
        %v369 = vld [vmem:[#allocation2 + $0x50] sm:$0xff]
        %v370 = vld [vmem:[#allocation2 + $0x58] sm:$0xff]
        %v371 = vld [vmem:[#allocation2 + $0x60] sm:$0xff]
        %v372 = vld [vmem:[#allocation2 + $0x68] sm:$0xff]
        %v373 = vld [vmem:[#allocation2 + $0x70] sm:$0xff]
        %v374 = vld [vmem:[#allocation2 + $0x78] sm:$0xff]
        %v375 = vld [vmem:[%s2] sm:$0xff]
        %v376 = vld [vmem:[%s2 + $0x8] sm:$0xff]
        %v377 = vld [vmem:[%s2 + $0x10] sm:$0xff]
        %v378 = vld [vmem:[%s2 + $0x18] sm:$0xff]
        %vm379 = vcmask 64512
        %v381 = vsel %vm379, %v375, 0
        %v384 = vsel %vm379, %v376, 0
        %v387 = vsel %vm379, %v377, 0
        %v390 = vsel %vm379, %v378, 0
        %392 = vmatprep.subr.mxu0 0.0
        %393 = vmatpush1.msra.mxu0 0.0
        %394 = vmatprep.subr.mxu0 0.0
        %395 = vmatpush1.msra.mxu0 0.0
        %396 = vmatprep.subr.mxu0 0.0
        %397 = vmatpush1.msra.mxu0 0.0
        %398 = vmatprep.subr.mxu0 0.0
        %399 = vmatpush1.msra.mxu0 0.0
        %400 = vmatprep.subr.mxu0 0.0
        %401 = vmatpush1.msra.mxu0 0.0
        %402 = vmatprep.subr.mxu0 0.0
        %403 = vmatpush1.msra.mxu0 0.0
        %404 = vmatprep.subr.mxu0 0.0
        %405 = vmatpush1.msra.mxu0 0.0
        %406 = vmatprep.subr.mxu0 0.0
        %407 = vmatpush1.msra.mxu0 0.0
        %408 = vmatprep.subr.mxu0 0.0
        %409 = vmatpush1.msra.mxu0 0.0
        %410 = vmatprep.subr.mxu0 0.0
        %411 = vmatpush1.msra.mxu0 0.0
        %412 = vmatprep.subr.mxu0 0.0
        %413 = vmatpush1.msra.mxu0 0.0
        %414 = vmatprep.subr.mxu0 0.0
        %415 = vmatpush1.msra.mxu0 0.0
        %416 = vmatprep.subr.mxu0 0.0
        %417 = vmatpush1.msra.mxu0 0.0
        %418 = vmatprep.subr.mxu0 0.0
        %419 = vmatpush1.msra.mxu0 0.0
        %420 = vmatprep.subr.mxu0 0.0
        %421 = vmatpush1.msra.mxu0 0.0
        %422 = vmatprep.subr.mxu0 0.0
        %423 = vmatpush1.msra.mxu0 %v358
        %424 = vmatprep.subr.mxu0 0.0
        %425 = vmatpush2.msra.mxu0 0.0
        %426 = vmatprep.subr.mxu0 0.0
        %427 = vmatpush2.msra.mxu0 0.0
        %428 = vmatprep.subr.mxu0 0.0
        %429 = vmatpush2.msra.mxu0 0.0
        %430 = vmatprep.subr.mxu0 0.0
        %431 = vmatpush2.msra.mxu0 0.0
        %432 = vmatprep.subr.mxu0 0.0
        %433 = vmatpush2.msra.mxu0 0.0
        %434 = vmatprep.subr.mxu0 0.0
        %435 = vmatpush2.msra.mxu0 0.0
        %436 = vmatprep.subr.mxu0 0.0
        %437 = vmatpush2.msra.mxu0 0.0
        %438 = vmatprep.subr.mxu0 0.0
        %439 = vmatpush2.msra.mxu0 0.0
        %440 = vmatprep.subr.mxu0 0.0
        %441 = vmatpush2.msra.mxu0 0.0
        %442 = vmatprep.subr.mxu0 0.0
        %443 = vmatpush2.msra.mxu0 0.0
        %444 = vmatprep.subr.mxu0 0.0
        %445 = vmatpush2.msra.mxu0 0.0
        %446 = vmatprep.subr.mxu0 0.0
        %447 = vmatpush2.msra.mxu0 0.0
        %448 = vmatprep.subr.mxu0 0.0
        %449 = vmatpush2.msra.mxu0 0.0
        %450 = vmatprep.subr.mxu0 0.0
        %451 = vmatpush2.msra.mxu0 0.0
        %452 = vmatprep.subr.mxu0 0.0
        %453 = vmatpush2.msra.mxu0 0.0
        %454 = vmatprep.subr.mxu0 0.0
        %455 = vmatpush2.msra.mxu0 0.0
        %456 = vmatprep.mubr.f32.mxu0 0.0
        %457 = vmatmul.mubr.f32.gmra.mxu0 %v381
        %v458 = vpop.f32.mrf.mxu0
        %v459 = vadd.f32 0.0, %v458
        %v460 = vpop.f32.mrf.mxu0
        %461 = vmatprep.mubr.f32.mxu0 0.0
        %462 = vmatmul.mubr.f32.gmra.mxu0 %v384
        %v463 = vpop.f32.mrf.mxu0
        %v464 = vadd.f32 0.0, %v463
        %v465 = vpop.f32.mrf.mxu0
        %466 = vmatprep.mubr.f32.mxu0 0.0
        %467 = vmatmul.mubr.f32.gmra.mxu0 %v387
        %v468 = vpop.f32.mrf.mxu0
        %v469 = vadd.f32 0.0, %v468
        %v470 = vpop.f32.mrf.mxu0
        %471 = vmatprep.mubr.f32.mxu0 0.0
        %472 = vmatmul.mubr.f32.gmra.mxu0 %v390
        %v473 = vpop.f32.mrf.mxu0
        %v474 = vadd.f32 0.0, %v473
        %v475 = vpop.f32.mrf.mxu0
        %476 = vdwg.mxu0
        %v477 = vld [vmem:[%s6] sm:$0xff]
        %v478 = vld [vmem:[%s6 + $0x8] sm:$0xff]
        %480 = vset.pattern.permute.xlu0 0
        %481 = vperm.xlu0 %480, %v477
        %v482 = vpop.permute.xlu0 %481
        %485 = vset.pattern.permute.xlu0 0
        %486 = vperm.xlu0 %485, %v478
        %v487 = vpop.permute.xlu0 %486
        %v489 = vadd.f32 %v459, %v482
        %v490 = vadd.f32 %v464, %v487
        %v491 = vld [vmem:[#allocation5] sm:$0xff]
        %v492 = vld [vmem:[#allocation5 + $0x8] sm:$0xff]
        %493 = vmatprep.subr.mxu0 0.0
        %494 = vmatpush1.msra.mxu0 %v374
        %495 = vmatprep.subr.mxu0 0.0
        %496 = vmatpush1.msra.mxu0 %v373
        %497 = vmatprep.subr.mxu0 0.0
        %498 = vmatpush1.msra.mxu0 %v372
        %499 = vmatprep.subr.mxu0 0.0
        %500 = vmatpush1.msra.mxu0 %v371
        %501 = vmatprep.subr.mxu0 0.0
        %502 = vmatpush1.msra.mxu0 %v370
        %503 = vmatprep.subr.mxu0 0.0
        %504 = vmatpush1.msra.mxu0 %v369
        %505 = vmatprep.subr.mxu0 0.0
        %506 = vmatpush1.msra.mxu0 %v368
        %507 = vmatprep.subr.mxu0 0.0
        %508 = vmatpush1.msra.mxu0 %v367
        %509 = vmatprep.subr.mxu0 0.0
        %510 = vmatpush1.msra.mxu0 %v366
        %511 = vmatprep.subr.mxu0 0.0
        %512 = vmatpush1.msra.mxu0 %v365
        %513 = vmatprep.subr.mxu0 0.0
        %514 = vmatpush1.msra.mxu0 %v364
        %515 = vmatprep.subr.mxu0 0.0
        %516 = vmatpush1.msra.mxu0 %v363
        %517 = vmatprep.subr.mxu0 0.0
        %518 = vmatpush1.msra.mxu0 %v362
        %519 = vmatprep.subr.mxu0 0.0
        %520 = vmatpush1.msra.mxu0 %v361
        %521 = vmatprep.subr.mxu0 0.0
        %522 = vmatpush1.msra.mxu0 %v360
        %523 = vmatprep.subr.mxu0 0.0
        %524 = vmatpush1.msra.mxu0 %v359
        %525 = vmatprep.subr.mxu0 0.0
        %526 = vmatpush2.msra.mxu0 0.0
        %527 = vmatprep.subr.mxu0 0.0
        %528 = vmatpush2.msra.mxu0 0.0
        %529 = vmatprep.subr.mxu0 0.0
        %530 = vmatpush2.msra.mxu0 0.0
        %531 = vmatprep.subr.mxu0 0.0
        %532 = vmatpush2.msra.mxu0 0.0
        %533 = vmatprep.subr.mxu0 0.0
        %534 = vmatpush2.msra.mxu0 0.0
        %535 = vmatprep.subr.mxu0 0.0
        %536 = vmatpush2.msra.mxu0 0.0
        %537 = vmatprep.subr.mxu0 0.0
        %538 = vmatpush2.msra.mxu0 0.0
        %539 = vmatprep.subr.mxu0 0.0
        %540 = vmatpush2.msra.mxu0 0.0
        %541 = vmatprep.subr.mxu0 0.0
        %542 = vmatpush2.msra.mxu0 0.0
        %543 = vmatprep.subr.mxu0 0.0
        %544 = vmatpush2.msra.mxu0 0.0
        %545 = vmatprep.subr.mxu0 0.0
        %546 = vmatpush2.msra.mxu0 0.0
        %547 = vmatprep.subr.mxu0 0.0
        %548 = vmatpush2.msra.mxu0 0.0
        %549 = vmatprep.subr.mxu0 0.0
        %550 = vmatpush2.msra.mxu0 0.0
        %551 = vmatprep.subr.mxu0 0.0
        %552 = vmatpush2.msra.mxu0 0.0
        %553 = vmatprep.subr.mxu0 0.0
        %554 = vmatpush2.msra.mxu0 0.0
        %555 = vmatprep.subr.mxu0 0.0
        %556 = vmatpush2.msra.mxu0 0.0
        %557 = vmatprep.mubr.f32.mxu0 0.0
        %558 = vmatmul.mubr.f32.gmra.mxu0 %v469
        %v559 = vpop.f32.mrf.mxu0
        %v560 = vadd.f32 %v491, %v559
        %v561 = vpop.f32.mrf.mxu0
        %562 = vmatprep.mubr.f32.mxu0 0.0
        %563 = vmatmul.mubr.f32.gmra.mxu0 %v474
        %v564 = vpop.f32.mrf.mxu0
        %v565 = vadd.f32 %v492, %v564
        %v566 = vpop.f32.mrf.mxu0
        %567 = vdwg.mxu0
        %v568 = vmul.f32 %v489, 0.5
        %v569 = vmul.f32 %v490, 0.5
        %v570 = vadd.f32 %v560, %v568
        %v571 = vadd.f32 %v565, %v569
        %v572 = vmax.f32 %v570, 0.0
        %v573 = vmax.f32 %v571, 0.0
        %v574 = vld [vmem:[%s3] sm:$0xff]
        %v575 = vld [vmem:[%s3 + $0x8] sm:$0xff]
        %vm576 = vcmask 130048
        %v578 = vsel %vm576, %v574, 0
        %v581 = vsel %vm576, %v575, 0
        %583 = vmatprep.subr.mxu0 0.0
        %584 = vmatpush1.msra.mxu0 0.0
        %585 = vmatprep.subr.mxu0 0.0
        %586 = vmatpush1.msra.mxu0 0.0
        %587 = vmatprep.subr.mxu0 0.0
        %588 = vmatpush1.msra.mxu0 0.0
        %589 = vmatprep.subr.mxu0 0.0
        %590 = vmatpush1.msra.mxu0 0.0
        %591 = vmatprep.subr.mxu0 0.0
        %592 = vmatpush1.msra.mxu0 0.0
        %593 = vmatprep.subr.mxu0 0.0
        %594 = vmatpush1.msra.mxu0 0.0
        %595 = vmatprep.subr.mxu0 0.0
        %596 = vmatpush1.msra.mxu0 0.0
        %597 = vmatprep.subr.mxu0 0.0
        %598 = vmatpush1.msra.mxu0 0.0
        %599 = vmatprep.subr.mxu0 0.0
        %600 = vmatpush1.msra.mxu0 0.0
        %601 = vmatprep.subr.mxu0 0.0
        %602 = vmatpush1.msra.mxu0 0.0
        %603 = vmatprep.subr.mxu0 0.0
        %604 = vmatpush1.msra.mxu0 0.0
        %605 = vmatprep.subr.mxu0 0.0
        %606 = vmatpush1.msra.mxu0 0.0
        %607 = vmatprep.subr.mxu0 0.0
        %608 = vmatpush1.msra.mxu0 0.0
        %609 = vmatprep.subr.mxu0 0.0
        %610 = vmatpush1.msra.mxu0 0.0
        %611 = vmatprep.subr.mxu0 0.0
        %612 = vmatpush1.msra.mxu0 %v573
        %613 = vmatprep.subr.mxu0 0.0
        %614 = vmatpush1.msra.mxu0 %v572
        %615 = vmatprep.subr.mxu0 0.0
        %616 = vmatpush2.msra.mxu0 0.0
        %617 = vmatprep.subr.mxu0 0.0
        %618 = vmatpush2.msra.mxu0 0.0
        %619 = vmatprep.subr.mxu0 0.0
        %620 = vmatpush2.msra.mxu0 0.0
        %621 = vmatprep.subr.mxu0 0.0
        %622 = vmatpush2.msra.mxu0 0.0
        %623 = vmatprep.subr.mxu0 0.0
        %624 = vmatpush2.msra.mxu0 0.0
        %625 = vmatprep.subr.mxu0 0.0
        %626 = vmatpush2.msra.mxu0 0.0
        %627 = vmatprep.subr.mxu0 0.0
        %628 = vmatpush2.msra.mxu0 0.0
        %629 = vmatprep.subr.mxu0 0.0
        %630 = vmatpush2.msra.mxu0 0.0
        %631 = vmatprep.subr.mxu0 0.0
        %632 = vmatpush2.msra.mxu0 0.0
        %633 = vmatprep.subr.mxu0 0.0
        %634 = vmatpush2.msra.mxu0 0.0
        %635 = vmatprep.subr.mxu0 0.0
        %636 = vmatpush2.msra.mxu0 0.0
        %637 = vmatprep.subr.mxu0 0.0
        %638 = vmatpush2.msra.mxu0 0.0
        %639 = vmatprep.subr.mxu0 0.0
        %640 = vmatpush2.msra.mxu0 0.0
        %641 = vmatprep.subr.mxu0 0.0
        %642 = vmatpush2.msra.mxu0 0.0
        %643 = vmatprep.subr.mxu0 0.0
        %644 = vmatpush2.msra.mxu0 0.0
        %645 = vmatprep.subr.mxu0 0.0
        %646 = vmatpush2.msra.mxu0 0.0
        %647 = vmatprep.mubr.f32.mxu0 0.0
        %648 = vmatmul.mubr.f32.gmra.mxu0 %v578
        %v649 = vpop.f32.mrf.mxu0
        %v650 = vadd.f32 0.0, %v649
        %v651 = vpop.f32.mrf.mxu0
        %652 = vmatprep.mubr.f32.mxu0 0.0
        %653 = vmatmul.mubr.f32.gmra.mxu0 %v581
        %v654 = vpop.f32.mrf.mxu0
        %v655 = vadd.f32 0.0, %v654
        %v656 = vpop.f32.mrf.mxu0
        %657 = vdwg.mxu0
        %v658 = vld [vmem:[%s7] sm:$0xff]
        %v659 = vld [vmem:[%s7 + $0x8] sm:$0xff]
        %661 = vset.pattern.permute.xlu0 0
        %662 = vperm.xlu0 %661, %v658
        %v663 = vpop.permute.xlu0 %662
        %666 = vset.pattern.permute.xlu0 0
        %667 = vperm.xlu0 %666, %v659
        %v668 = vpop.permute.xlu0 %667
        %670 = vmatprep.subr.mxu0 0.0
        %671 = vmatpush1.msra.mxu0 %v374
        %672 = vmatprep.subr.mxu0 0.0
        %673 = vmatpush1.msra.mxu0 %v373
        %674 = vmatprep.subr.mxu0 0.0
        %675 = vmatpush1.msra.mxu0 %v372
        %676 = vmatprep.subr.mxu0 0.0
        %677 = vmatpush1.msra.mxu0 %v371
        %678 = vmatprep.subr.mxu0 0.0
        %679 = vmatpush1.msra.mxu0 %v370
        %680 = vmatprep.subr.mxu0 0.0
        %681 = vmatpush1.msra.mxu0 %v369
        %682 = vmatprep.subr.mxu0 0.0
        %683 = vmatpush1.msra.mxu0 %v368
        %684 = vmatprep.subr.mxu0 0.0
        %685 = vmatpush1.msra.mxu0 %v367
        %686 = vmatprep.subr.mxu0 0.0
        %687 = vmatpush1.msra.mxu0 %v366
        %688 = vmatprep.subr.mxu0 0.0
        %689 = vmatpush1.msra.mxu0 %v365
        %690 = vmatprep.subr.mxu0 0.0
        %691 = vmatpush1.msra.mxu0 %v364
        %692 = vmatprep.subr.mxu0 0.0
        %693 = vmatpush1.msra.mxu0 %v363
        %694 = vmatprep.subr.mxu0 0.0
        %695 = vmatpush1.msra.mxu0 %v362
        %696 = vmatprep.subr.mxu0 0.0
        %697 = vmatpush1.msra.mxu0 %v361
        %698 = vmatprep.subr.mxu0 0.0
        %699 = vmatpush1.msra.mxu0 %v360
        %700 = vmatprep.subr.mxu0 0.0
        %701 = vmatpush1.msra.mxu0 %v359
        %702 = vmatprep.subr.mxu0 0.0
        %703 = vmatpush2.msra.mxu0 0.0
        %704 = vmatprep.subr.mxu0 0.0
        %705 = vmatpush2.msra.mxu0 0.0
        %706 = vmatprep.subr.mxu0 0.0
        %707 = vmatpush2.msra.mxu0 0.0
        %708 = vmatprep.subr.mxu0 0.0
        %709 = vmatpush2.msra.mxu0 0.0
        %710 = vmatprep.subr.mxu0 0.0
        %711 = vmatpush2.msra.mxu0 0.0
        %712 = vmatprep.subr.mxu0 0.0
        %713 = vmatpush2.msra.mxu0 0.0
        %714 = vmatprep.subr.mxu0 0.0
        %715 = vmatpush2.msra.mxu0 0.0
        %716 = vmatprep.subr.mxu0 0.0
        %717 = vmatpush2.msra.mxu0 0.0
        %718 = vmatprep.subr.mxu0 0.0
        %719 = vmatpush2.msra.mxu0 0.0
        %720 = vmatprep.subr.mxu0 0.0
        %721 = vmatpush2.msra.mxu0 0.0
        %722 = vmatprep.subr.mxu0 0.0
        %723 = vmatpush2.msra.mxu0 0.0
        %724 = vmatprep.subr.mxu0 0.0
        %725 = vmatpush2.msra.mxu0 0.0
        %726 = vmatprep.subr.mxu0 0.0
        %727 = vmatpush2.msra.mxu0 0.0
        %728 = vmatprep.subr.mxu0 0.0
        %729 = vmatpush2.msra.mxu0 0.0
        %730 = vmatprep.subr.mxu0 0.0
        %731 = vmatpush2.msra.mxu0 0.0
        %732 = vmatprep.subr.mxu0 0.0
        %733 = vmatpush2.msra.mxu0 0.0
        %734 = vmatprep.mubr.f32.mxu0 0.0
        %735 = vmatmul.mubr.f32.gmra.mxu0 %v650
        %v736 = vpop.f32.mrf.mxu0
        %v737 = vadd.f32 %v663, %v736
        %v738 = vpop.f32.mrf.mxu0
        %739 = vmatprep.mubr.f32.mxu0 0.0
        %740 = vmatmul.mubr.f32.gmra.mxu0 %v655
        %v741 = vpop.f32.mrf.mxu0
        %v742 = vadd.f32 %v668, %v741
        %v743 = vpop.f32.mrf.mxu0
        %744 = vdwg.mxu0
        %v745 = vadd.f32 %v737, %v568
        %v746 = vadd.f32 %v742, %v569
        %v747 = vmax.f32 %v745, 0.0
        %v748 = vmax.f32 %v746, 0.0
        %v749 = vadd.f32 %v572, %v747
        %v750 = vadd.f32 %v573, %v748
        %v751 = vld [vmem:[%s4] sm:$0xf]
        %v752 = vld [vmem:[%s8] sm:$0xf]
        %754 = vset.pattern.permute.xlu0 0
        %755 = vperm.xlu0 %754, %v752
        %v756 = vpop.permute.xlu0 %755
        %v759 = vsel %vm576, %v751, 0
        %761 = vmatprep.subr.mxu0 0.0
        %762 = vmatpush1.msra.mxu0 0.0
        %763 = vmatprep.subr.mxu0 0.0
        %764 = vmatpush1.msra.mxu0 0.0
        %765 = vmatprep.subr.mxu0 0.0
        %766 = vmatpush1.msra.mxu0 0.0
        %767 = vmatprep.subr.mxu0 0.0
        %768 = vmatpush1.msra.mxu0 0.0
        %769 = vmatprep.subr.mxu0 0.0
        %770 = vmatpush1.msra.mxu0 0.0
        %771 = vmatprep.subr.mxu0 0.0
        %772 = vmatpush1.msra.mxu0 0.0
        %773 = vmatprep.subr.mxu0 0.0
        %774 = vmatpush1.msra.mxu0 0.0
        %775 = vmatprep.subr.mxu0 0.0
        %776 = vmatpush1.msra.mxu0 0.0
        %777 = vmatprep.subr.mxu0 0.0
        %778 = vmatpush1.msra.mxu0 0.0
        %779 = vmatprep.subr.mxu0 0.0
        %780 = vmatpush1.msra.mxu0 0.0
        %781 = vmatprep.subr.mxu0 0.0
        %782 = vmatpush1.msra.mxu0 0.0
        %783 = vmatprep.subr.mxu0 0.0
        %784 = vmatpush1.msra.mxu0 0.0
        %785 = vmatprep.subr.mxu0 0.0
        %786 = vmatpush1.msra.mxu0 0.0
        %787 = vmatprep.subr.mxu0 0.0
        %788 = vmatpush1.msra.mxu0 0.0
        %789 = vmatprep.subr.mxu0 0.0
        %790 = vmatpush1.msra.mxu0 %v750
        %791 = vmatprep.subr.mxu0 0.0
        %792 = vmatpush1.msra.mxu0 %v749
        %793 = vmatprep.subr.mxu0 0.0
        %794 = vmatpush2.msra.mxu0 0.0
        %795 = vmatprep.subr.mxu0 0.0
        %796 = vmatpush2.msra.mxu0 0.0
        %797 = vmatprep.subr.mxu0 0.0
        %798 = vmatpush2.msra.mxu0 0.0
        %799 = vmatprep.subr.mxu0 0.0
        %800 = vmatpush2.msra.mxu0 0.0
        %801 = vmatprep.subr.mxu0 0.0
        %802 = vmatpush2.msra.mxu0 0.0
        %803 = vmatprep.subr.mxu0 0.0
        %804 = vmatpush2.msra.mxu0 0.0
        %805 = vmatprep.subr.mxu0 0.0
        %806 = vmatpush2.msra.mxu0 0.0
        %807 = vmatprep.subr.mxu0 0.0
        %808 = vmatpush2.msra.mxu0 0.0
        %809 = vmatprep.subr.mxu0 0.0
        %810 = vmatpush2.msra.mxu0 0.0
        %811 = vmatprep.subr.mxu0 0.0
        %812 = vmatpush2.msra.mxu0 0.0
        %813 = vmatprep.subr.mxu0 0.0
        %814 = vmatpush2.msra.mxu0 0.0
        %815 = vmatprep.subr.mxu0 0.0
        %816 = vmatpush2.msra.mxu0 0.0
        %817 = vmatprep.subr.mxu0 0.0
        %818 = vmatpush2.msra.mxu0 0.0
        %819 = vmatprep.subr.mxu0 0.0
        %820 = vmatpush2.msra.mxu0 0.0
        %821 = vmatprep.subr.mxu0 0.0
        %822 = vmatpush2.msra.mxu0 0.0
        %823 = vmatprep.subr.mxu0 0.0
        %824 = vmatpush2.msra.mxu0 0.0
        %825 = vmatprep.mubr.f32.mxu0 0.0
        %826 = vmatmul.mubr.f32.gmra.mxu0 %v759
        %v827 = vpop.f32.mrf.mxu0
        %v828 = vadd.f32 %v756, %v827
        %v829 = vpop.f32.mrf.mxu0
        %830 = vdwg.mxu0
        %831 = vst [vmem:[%s353] sm:$0xf] %v828
        %s832 = sand.u32 %s227, 1
        %s833 = scalar_lea.sflag [#allocation4], %s832
        %s834 = sand.u32 %s227, 1
        %s835 = smul.addr %s834, 4
        %s836 = scalar_lea.vmem [#allocation7], %s835
        // Predicated region
        $region65: #{gcn_forward.1} parent=55 // pred_check
          %p837 = pneg %p237
        $region66: #{gcn_forward.1} parent=55 // pred_check_branch
          %839 = sbr.rel (%p837) target = $region68
        $region67: #{gcn_forward.1} parent=55 // pred_region
          %s841 = ssub.s32 64, 64
          %842 = vsyncadd %s833, %s841
          %s843 = smul.addr %s25, 64
          %s844 = scalar_lea.hbm %s9, %s843
          %s846 = sshll.u32 %s836, 4
          %s847 = int_to_ptr.vmem [resolvable:$true] %s846
          %849 = dma.vmem_to_hbm [thread:$0]  %s847, 64, %s844, %s833
        $region68: #{gcn_forward.1} parent=55 // pred_fallthru
          _
      $region56: #{gcn_forward.1} parent=5 // pred_fallthru
        _
      %p850 = scmp.le.s32.totalorder 2, %s20
      // Predicated region
      $region69: #{gcn_forward.1} parent=5 // pred_check
        %p851 = pneg %p850
      $region70: #{gcn_forward.1} parent=5 // pred_check_branch
        %853 = sbr.rel (%p851) target = $region72
      $region71: #{gcn_forward.1} parent=5 // pred_region
        %s854 = ssub.s32 %s20, 2
        // Predicated region
        $region73: #{gcn_forward.1} parent=71 // pred_check
          %p855 = pneg %p243
        $region74: #{gcn_forward.1} parent=71 // pred_check_branch
          %857 = sbr.rel (%p855) target = $region76
        $region75: #{gcn_forward.1} parent=71 // pred_region
          %s858 = sand.u32 %s228, 1
          %s859 = scalar_lea.sflag [#allocation4], %s858
          %s860 = sand.u32 %s228, 1
          %s861 = smul.addr %s860, 4
          %s862 = scalar_lea.vmem [#allocation7], %s861
          %863 = dma.done %s859, 64
        $region76: #{gcn_forward.1} parent=71 // pred_fallthru
          _
      $region72: #{gcn_forward.1} parent=5 // pred_fallthru
        _
    $region6: #{gcn_forward.1} parent=1 // loop_footer
      %s24 = sadd.s32 1, %s20
    $region7: #{gcn_forward.1} parent=1 // loop_footer_branch
      %19 = sbr.rel target = $region3
    $region8: #{gcn_forward.1} parent=1 // loop_exit
      _
    %864 = vsyncpa [#allocation3], 1
    %s865 = scalar_lea.sflag [#allocation3], 1
    %866 = vsyncpa %s865, 1
    %867 = vsyncpa [#allocation6], 1
    %868 = vsyncpa [#allocation4], 1
    %s869 = scalar_lea.sflag [#allocation4], 1
    %870 = vsyncpa %s869, 1

</llo_original>
